<compile_context>
chip_gen: v6e
topology: v6e:2x2x1
jax: 0.10.0
libtpu: 0.0.40
codegen_flags: <defaults>
</compile_context>

<pallas_src>
import jax
import jax.numpy as jnp
from jax.experimental import pallas as pl
from jax.experimental.pallas import tpu as pltpu

_LANE = 128


def _round_up(x, m):
    return ((x + m - 1) // m) * m


def _device_defaults():
    """(max_block_rows, n_split) tuned per TPU generation."""
    try:
        kind = jax.devices()[0].device_kind.lower().replace(" ", "")
    except Exception:
        kind = ""
    if "v7" in kind or "tpu7" in kind:
        return 4096, 2   # 2 TensorCores, 3.2 TB/s HBM -> bigger blocks + 2-way split
    return 1024, 1       # v5e / v6e: single TensorCore


def _loss_kernel(d_ref, te_ref, out_ref, acc_ref):
    """d:  (block_rows,128) f32  pairwise logit difference.
       te: (block_rows,128) f32  target with mask encoded in the sign (-1.0 => masked out).
       out_ref: (8,128) f32 per-split partial sum (broadcast scalar).
       acc_ref: (8,128) f32 VMEM accumulator."""
    i = pl.program_id(1)  # reduction ("arbitrary") axis

    @pl.when(i == 0)
    def _init():
        acc_ref[...] = jnp.zeros_like(acc_ref)

    d = d_ref[...]
    te = te_ref[...]
    m = (te >= 0.0).astype(jnp.float32)   # 1.0 where selected, 0.0 for masked-out / padding
    t = jnp.maximum(te, 0.0)

    # t*log(sigmoid(d)) + (1-t)*log(1-sigmoid(d)) == t*d - softplus(d), stable form.
    softplus = jnp.maximum(d, 0.0) + jnp.log1p(jnp.exp(-jnp.abs(d)))
    term = m * (t * d - softplus)          # unmasked / padded rows contribute exactly 0

    # Fold (block_rows,128) -> (8,128) with sublane-aligned vreg adds (VPU only, no XLU).
    acc_ref[...] += jnp.sum(term.reshape(term.shape[0] // 8, 8, _LANE), axis=0)

    @pl.when(i == pl.num_programs(1) - 1)
    def _finalize():
        s = jnp.sum(acc_ref[...])
        out_ref[...] = jnp.zeros_like(out_ref) + s


def custom_loss(inputs, target, mask, *, max_block_rows=None, n_split=None):
    """inputs: (N, 2) f32, target: (N,) f32, mask: (N,) bool -> scalar f32 loss."""
    n = inputs.shape[0]
    dev_block, dev_split = _device_defaults()
    if max_block_rows is None:
        max_block_rows = dev_block

    rows = max(1, -(-n // _LANE))                        # cdiv(n, 128)
    block_rows = min(_round_up(max_block_rows, 8), _round_up(rows, 8))
    steps_total = -(-rows // block_rows)
    if n_split is None:
        # Only split the reduction when there are >= 4 blocks of real work (v7x only).
        n_split = dev_split if steps_total >= 4 else 1

    rows_pad = _round_up(rows, block_rows * n_split)
    n_pad = rows_pad * _LANE
    pad = n_pad - n

    # Two fused streams: the pairwise difference and the sign-encoded target.
    d = jnp.pad((inputs[:, 1] - inputs[:, 0]).astype(jnp.float32), (0, pad)).reshape(
        rows_pad, _LANE)
    t_enc = jnp.where(mask, target.astype(jnp.float32), -1.0)
    te = jnp.pad(t_enc, (0, pad), constant_values=-1.0).reshape(rows_pad, _LANE)

    # Exact integer mask count, computed where XLA can fuse it into the mask read.
    count = jnp.sum(mask.astype(jnp.int32)).astype(jnp.float32)

    steps = rows_pad // (block_rows * n_split)
    grid = (n_split, steps)

    def in_map(c, i):
        # Round-robin blocks over the splits so a ragged tail is balanced across TCs.
        return (i * n_split + c, 0)

    tile = lambda: pl.BlockSpec((block_rows, _LANE), in_map)

    out = pl.pallas_call(
        _loss_kernel,
        out_shape=jax.ShapeDtypeStruct((n_split * 8, _LANE), jnp.float32),
        grid_spec=pltpu.PrefetchScalarGridSpec(
            num_scalar_prefetch=0,
            grid=grid,
            in_specs=[tile(), tile()],
            out_specs=pl.BlockSpec((8, _LANE), lambda c, i: (c, 0)),
            scratch_shapes=[pltpu.VMEM((8, _LANE), jnp.float32)],
        ),
        compiler_params=pltpu.CompilerParams(
            dimension_semantics=("parallel", "arbitrary"),
            vmem_limit_bytes=32 * 1024 * 1024,
        ),
    )(d, te)

    total = out.reshape(n_split, 8, _LANE)[:, 0, 0].sum()
    return -total / count


def _reference_loss(inputs, target, mask):
    """Pure-JAX replica of the PyTorch forward (masked_select -> compact -> BCE)."""
    sel_in = inputs[mask]
    sel_t = target[mask]
    p = jax.nn.sigmoid(sel_in[:, 1] - sel_in[:, 0])
    return -(sel_t * jnp.log(p) + (1.0 - sel_t) * jnp.log(1.0 - p)).sum() / mask.sum()


if __name__ == "__main__":
    def run_case(key, n, **kw):
        k1, k2, k3 = jax.random.split(key, 3)
        inputs = jax.random.normal(k1, (n, 2), dtype=jnp.float32)
        target = jax.random.bernoulli(k2, 0.5, (n,)).astype(jnp.float32)
        mask = jax.random.bernoulli(k3, 0.7, (n,))  # bool mask
        loss = custom_loss(inputs, target, mask, **kw)
        jax.block_until_ready(loss)
        ref = _reference_loss(inputs, target, mask)
        assert jnp.allclose(loss, ref, rtol=1e-4, atol=1e-5), (n, loss, ref)

    # Small case (single block, single split, generation defaults).
    run_case(jax.random.PRNGKey(0), 256)
    # Moderate case on the default (auto) path.
    run_case(jax.random.PRNGKey(2), 4096)
    # Exercise the multi-step + 2-way-split + round-robin path with small blocks.
    run_case(jax.random.PRNGKey(1), 20000, max_block_rows=32, n_split=2)

    print("KERNEL_OK")
</pallas_src>

<mosaic_0001>
module attributes {stable_mosaic.version = 11 : i64} {
  func.func @_loss_kernel(%arg0: i32, %arg1: i32, %arg2: memref<8x128xf32, #tpu.memory_space<vmem>>, %arg3: memref<8x128xf32, #tpu.memory_space<vmem>>, %arg4: memref<8x128xf32, #tpu.memory_space<vmem>>, %arg5: memref<8x128xf32, #tpu.memory_space<vmem>>) attributes {dimension_semantics = [#tpu.dimension_semantics<parallel>, #tpu.dimension_semantics<arbitrary>], iteration_bounds = array<i64: 1, 1>, scalar_prefetch = 0 : i64, scratch_operands = 1 : i64, tpu.core_type = #tpu.core_type<tc>, window_params = [{transform_indices = @transform_0, window_bounds = array<i64: 8, 128>}, {transform_indices = @transform_1, window_bounds = array<i64: 8, 128>}, {transform_indices = @transform_2, window_bounds = array<i64: 8, 128>}]} {
    %c0_i32 = arith.constant 0 : i32
    %0 = arith.cmpi eq, %arg1, %c0_i32 : i32
    %1 = arith.extui %0 : i1 to i32
    %c0_i32_0 = arith.constant 0 : i32
    %2 = arith.cmpi ne, %1, %c0_i32_0 : i32
    scf.if %2 {
      %cst_14 = arith.constant 0.000000e+00 : f32
      %30 = vector.broadcast %cst_14 : f32 to vector<8x128xf32>
      %c0_15 = arith.constant 0 : index
      %c0_16 = arith.constant 0 : index
      %31 = vector.load %arg5[%c0_15, %c0_16] : memref<8x128xf32, #tpu.memory_space<vmem>>, vector<8x128xf32>
      tpu.vector_store %arg5[%c0_15, %c0_16], %30 {strides = array<i32>} : memref<8x128xf32, #tpu.memory_space<vmem>>, vector<8x128xf32>,
    } else {
    }
    %c0 = arith.constant 0 : index
    %c0_1 = arith.constant 0 : index
    %3 = vector.load %arg2[%c0, %c0_1] : memref<8x128xf32, #tpu.memory_space<vmem>>, vector<8x128xf32>
    %c0_2 = arith.constant 0 : index
    %c0_3 = arith.constant 0 : index
    %4 = vector.load %arg3[%c0_2, %c0_3] : memref<8x128xf32, #tpu.memory_space<vmem>>, vector<8x128xf32>
    %cst = arith.constant 0.000000e+00 : f32
    %5 = vector.broadcast %cst : f32 to vector<8x128xf32>
    %6 = arith.cmpf oge, %4, %5 : vector<8x128xf32>
    %7 = arith.extui %6 : vector<8x128xi1> to vector<8x128xi32>
    %8 = arith.sitofp %7 : vector<8x128xi32> to vector<8x128xf32>
    %cst_4 = arith.constant 0.000000e+00 : f32
    %9 = vector.broadcast %cst_4 : f32 to vector<8x128xf32>
    %10 = arith.maximumf %4, %9 : vector<8x128xf32>
    %cst_5 = arith.constant 0.000000e+00 : f32
    %11 = vector.broadcast %cst_5 : f32 to vector<8x128xf32>
    %12 = arith.maximumf %3, %11 : vector<8x128xf32>
    %13 = math.absf %3 : vector<8x128xf32>
    %cst_6 = arith.constant 0.000000e+00 : f32
    %14 = vector.broadcast %cst_6 : f32 to vector<8x128xf32>
    %15 = arith.subf %14, %13 : vector<8x128xf32>
    %16 = math.exp %15 : vector<8x128xf32>
    %17 = math.log1p %16 : vector<8x128xf32>
    %18 = arith.addf %12, %17 : vector<8x128xf32>
    %19 = arith.mulf %10, %3 : vector<8x128xf32>
    %20 = arith.subf %19, %18 : vector<8x128xf32>
    %21 = arith.mulf %8, %20 : vector<8x128xf32>
    %c0_7 = arith.constant 0 : index
    %c0_8 = arith.constant 0 : index
    %22 = vector.load %arg5[%c0_7, %c0_8] : memref<8x128xf32, #tpu.memory_space<vmem>>, vector<8x128xf32>
    %23 = vector.shape_cast %21 : vector<8x128xf32> to vector<1x8x128xf32>
    %cst_9 = arith.constant dense<0.000000e+00> : vector<8x128xf32>
    %24 = vector.multi_reduction <add>, %23, %cst_9 [0] : vector<1x8x128xf32> to vector<8x128xf32>
    %25 = arith.addf %22, %24 : vector<8x128xf32>
    %c0_10 = arith.constant 0 : index
    %c0_11 = arith.constant 0 : index
    %26 = vector.load %arg5[%c0_10, %c0_11] : memref<8x128xf32, #tpu.memory_space<vmem>>, vector<8x128xf32>
    tpu.vector_store %arg5[%c0_10, %c0_11], %25 {strides = array<i32>} : memref<8x128xf32, #tpu.memory_space<vmem>>, vector<8x128xf32>,
    %c0_i32_12 = arith.constant 0 : i32
    %27 = arith.cmpi eq, %arg1, %c0_i32_12 : i32
    %28 = arith.extui %27 : i1 to i32
    %c0_i32_13 = arith.constant 0 : i32
    %29 = arith.cmpi ne, %28, %c0_i32_13 : i32
    scf.if %29 {
      %c0_14 = arith.constant 0 : index
      %c0_15 = arith.constant 0 : index
      %30 = vector.load %arg5[%c0_14, %c0_15] : memref<8x128xf32, #tpu.memory_space<vmem>>, vector<8x128xf32>
      %31 = vector.shape_cast %30 : vector<8x128xf32> to vector<1x8x128xf32>
      %cst_16 = arith.constant dense<0.000000e+00> : vector<1xf32>
      %32 = vector.multi_reduction <add>, %31, %cst_16 [1, 2] : vector<1x8x128xf32> to vector<1xf32>
      %33 = vector.shape_cast %32 : vector<1xf32> to vector<1x1x1xf32>
      %34 = vector.extract %33[0, 0, 0] : f32 from vector<1x1x1xf32>
      %cst_17 = arith.constant 0.000000e+00 : f32
      %35 = vector.broadcast %cst_17 : f32 to vector<8x128xf32>
      %36 = vector.broadcast %34 : f32 to vector<8x128xf32>
      %37 = arith.addf %35, %36 : vector<8x128xf32>
      %c0_18 = arith.constant 0 : index
      %c0_19 = arith.constant 0 : index
      %38 = vector.load %arg4[%c0_18, %c0_19] : memref<8x128xf32, #tpu.memory_space<vmem>>, vector<8x128xf32>
      tpu.vector_store %arg4[%c0_18, %c0_19], %37 {strides = array<i32>} : memref<8x128xf32, #tpu.memory_space<vmem>>, vector<8x128xf32>,
    } else {
    }
    return
  }
  func.func @transform_0(%arg0: i32, %arg1: i32) -> (i32, i32) {
    %c1_i32 = arith.constant 1 : i32
    %0 = arith.muli %arg1, %c1_i32 : i32
    %1 = arith.addi %0, %arg0 : i32
    %c0_i32 = arith.constant 0 : i32
    %c0_i32_0 = arith.constant 0 : i32
    return %1, %c0_i32 : i32, i32
  }
  func.func @transform_1(%arg0: i32, %arg1: i32) -> (i32, i32) {
    %c1_i32 = arith.constant 1 : i32
    %0 = arith.muli %arg1, %c1_i32 : i32
    %1 = arith.addi %0, %arg0 : i32
    %c0_i32 = arith.constant 0 : i32
    %c0_i32_0 = arith.constant 0 : i32
    return %1, %c0_i32 : i32, i32
  }
  func.func @transform_2(%arg0: i32, %arg1: i32) -> (i32, i32) {
    %c0_i32 = arith.constant 0 : i32
    %c0_i32_0 = arith.constant 0 : i32
    return %arg0, %c0_i32 : i32, i32
  }
}

</mosaic_0001>

<llo_original>
// kernel: tpu_custom_call.1
$region0: #{tpu_custom_call.1}
  #allocation0 [shape = 'u32[]', space=smem, size = 0x4, offset = 0x4, fixed_abs, tag = 'smem constant byte address 0x4 - core index']
  #allocation1 [shape = 'u32[144,128]{1,0:T(1,128)}', space=vmem, size = 0x12000, scoped, tag = 'internal scratch']
  #allocation2 [shape = 'f32[8,128]{1,0:T(8,128)}', space=vmem, size = 0x1000, scoped, tag = 'scratch operand']
  %s0 = inlined_call_operand.hbm [shape: f32[8,128], index: 0, kind: input, shape index: {}]
  %s1 = inlined_call_operand.hbm [shape: f32[8,128], index: 1, kind: input, shape index: {}]
  %s2 = inlined_call_operand.hbm [shape: f32[8,128], index: 2, kind: output, shape index: {}]
  %s3 = sld [smem:[#allocation0]]
  $region34: #{tpu_custom_call.1} parent=0
    _
  %s5 = ssub.s32 1, %s3
  %s6 = scalar_select 0, %s5, %s3
  $region1: #{tpu_custom_call.1} parent=0
    #allocation3 [shape = 'u8[4096]{0}', space=vmem, size = 0x1000, scoped, tag = 'input window, operand 0, single buffered']
    #allocation4 [shape = 's32[1]{0}', space=sflag, size = 0x4, scoped, tag = 'scoped memory for tpu_custom_call.1']
    #allocation5 [shape = 's32[1]{0}', space=sflag, size = 0x4, scoped, tag = 'scoped memory for tpu_custom_call.1']
    #allocation6 [shape = 'u8[4096]{0}', space=vmem, size = 0x1000, scoped, tag = 'input window, operand 1, single buffered']
    #allocation7 [shape = 's32[1]{0}', space=sflag, size = 0x4, scoped, tag = 'scoped memory for tpu_custom_call.1']
    #allocation8 [shape = 'u8[4096]{0}', space=vmem, size = 0x1000, scoped, tag = 'output window, operand 0, single buffered']
    %7 = vsyncpa [#allocation4], 0
    %8 = vsyncpa [#allocation7], 0
    %9 = vsyncpa [#allocation5], 0
    // Predicated region
    $region2: #{tpu_custom_call.1} parent=1 // pred_check
      _
    $region3: #{tpu_custom_call.1} parent=1 // pred_check_branch
      %11 = sbr.rel (0) target = $region5
    $region4: #{tpu_custom_call.1} parent=1 // pred_region
      %s12 = sadd.s32 0, 0
      %s14 = ssub.s32 128, 128
      %15 = vsyncadd [#allocation4], %s14
      %s16 = smul.addr %s12, 128
      %s17 = scalar_lea.hbm %s0, %s16
      %s19 = sshll.u32 [#allocation3], 4
      %s20 = int_to_ptr.vmem [resolvable:$true] %s19
      %22 = dma.hbm_to_vmem [thread:$0]  %s17, 128, %s20, [#allocation4]
    $region5: #{tpu_custom_call.1} parent=1 // pred_fallthru
      _
    // Predicated region
    $region6: #{tpu_custom_call.1} parent=1 // pred_check
      _
    $region7: #{tpu_custom_call.1} parent=1 // pred_check_branch
      %24 = sbr.rel (0) target = $region9
    $region8: #{tpu_custom_call.1} parent=1 // pred_region
      %s25 = sadd.s32 0, 0
      %s27 = ssub.s32 128, 128
      %28 = vsyncadd [#allocation7], %s27
      %s29 = smul.addr %s25, 128
      %s30 = scalar_lea.hbm %s1, %s29
      %s32 = sshll.u32 [#allocation6], 4
      %s33 = int_to_ptr.vmem [resolvable:$true] %s32
      %35 = dma.hbm_to_vmem [thread:$0]  %s30, 128, %s33, [#allocation7]
    $region9: #{tpu_custom_call.1} parent=1 // pred_fallthru
      _
    // Predicated region
    $region10: #{tpu_custom_call.1} parent=1 // pred_check
      _
    $region11: #{tpu_custom_call.1} parent=1 // pred_check_branch
      %37 = sbr.rel (0) target = $region13
    $region12: #{tpu_custom_call.1} parent=1 // pred_region
      %38 = dma.done [#allocation4], 128
    $region13: #{tpu_custom_call.1} parent=1 // pred_fallthru
      _
    // Predicated region
    $region14: #{tpu_custom_call.1} parent=1 // pred_check
      _
    $region15: #{tpu_custom_call.1} parent=1 // pred_check_branch
      %40 = sbr.rel (0) target = $region17
    $region16: #{tpu_custom_call.1} parent=1 // pred_region
      %41 = dma.done [#allocation7], 128
    $region17: #{tpu_custom_call.1} parent=1 // pred_fallthru
      _
    %s42 = sadd.s32 0, 0
    %s43 = sadd.s32 0, 0
    %p44 = scmp.eq.s32.totalorder 0, 0
    // Predicated region
    $region18: #{tpu_custom_call.1} parent=1 // pred_check
      %p45 = pneg %p44
    $region19: #{tpu_custom_call.1} parent=1 // pred_check_branch
      %47 = sbr.rel (%p45) target = $region21
    $region20: #{tpu_custom_call.1} parent=1 // pred_region
      %48 = vst [vmem:[#allocation2] sm:$0xff] 0.0
    $region21: #{tpu_custom_call.1} parent=1 // pred_fallthru
      _
    %v49 = vld [vmem:[#allocation3] sm:$0xff]
    %v50 = vld [vmem:[#allocation6] sm:$0xff]
    %vm51 = vcmp.ge.f32.partialorder %v50, 0.0
    %v52 = vsel %vm51, 1, 0
    %v53 = vcvt.s32.f32 %v52
    %v54 = vmax.f32 %v50, 0.0
    %v55 = vmax.f32 %v49, 0.0
    %v56 = vand.u32 2147483647, %v49
    %v57 = vsub.f32 0.0, %v56
    %v58 = vmul.f32 %v57, 1.442695
    %v59 = vpow.pop %v58
    %v60 = vadd.f32 %v59, 1.0
    %v61 = vlog2.pop %v60
    %v62 = vmul.f32 %v61, 0.6931472
    %v63 = vmul.f32 -0.5, %v59
    %v64 = vadd.f32 %v63, 1.0
    %v65 = vmul.f32 %v64, %v59
    %v66 = vand.u32 2147483647, %v59
    %vm67 = vcmp.lt.f32.partialorder %v66, 0.0004427343
    %v68 = vsel %vm67, %v65, %v62
    %v69 = vadd.f32 %v55, %v68
    %v70 = vmul.f32 %v54, %v49
    %v71 = vsub.f32 %v70, %v69
    %v72 = vmul.f32 %v53, %v71
    %v73 = vld [vmem:[#allocation2] sm:$0xff]
    %v74 = vadd.f32 %v72, 0.0
    %v75 = vadd.f32 %v73, %v74
    %76 = vst [vmem:[#allocation2] sm:$0xff] %v75
    // Predicated region
    $region22: #{tpu_custom_call.1} parent=1 // pred_check
      %p77 = pneg %p44
    $region23: #{tpu_custom_call.1} parent=1 // pred_check_branch
      %79 = sbr.rel (%p77) target = $region25
    $region24: #{tpu_custom_call.1} parent=1 // pred_region
      %v80 = vld [vmem:[#allocation2] sm:$0xff]
      %81 = vadd.xlane.f32.xlu0 %v80
      %v82 = vpop.xlane.xlu0 %81
      %v83 = vrot.slane %v82, 4
      %v84 = vadd.f32 %v82, %v83
      %v85 = vrot.slane %v84, 2
      %v86 = vadd.f32 %v84, %v85
      %v87 = vrot.slane %v86, 1
      %v88 = vadd.f32 %v86, %v87
      %s89 = vtos %v88
      %v90 = vstv %s89
      %v91 = vadd.f32 %v90, 0.0
      %92 = vst [vmem:[#allocation8] sm:$0xff] %v91
    $region25: #{tpu_custom_call.1} parent=1 // pred_fallthru
      _
    // Predicated region
    $region26: #{tpu_custom_call.1} parent=1 // pred_check
      _
    $region27: #{tpu_custom_call.1} parent=1 // pred_check_branch
      %94 = sbr.rel (0) target = $region29
    $region28: #{tpu_custom_call.1} parent=1 // pred_region
      %s96 = ssub.s32 128, 128
      %97 = vsyncadd [#allocation5], %s96
      %s99 = sshll.u32 [#allocation8], 4
      %s100 = int_to_ptr.vmem [resolvable:$true] %s99
      %102 = dma.vmem_to_hbm [thread:$0]  %s100, 128, %s2, [#allocation5]
    $region29: #{tpu_custom_call.1} parent=1 // pred_fallthru
      _
    // Predicated region
    $region30: #{tpu_custom_call.1} parent=1 // pred_check
      _
    $region31: #{tpu_custom_call.1} parent=1 // pred_check_branch
      %104 = sbr.rel (0) target = $region33
    $region32: #{tpu_custom_call.1} parent=1 // pred_region
      %105 = dma.done [#allocation5], 128
    $region33: #{tpu_custom_call.1} parent=1 // pred_fallthru
      _
    %106 = vsyncpa [#allocation4], 1
    %107 = vsyncpa [#allocation7], 1
    %108 = vsyncpa [#allocation5], 1

</llo_original>
